<compile_context>
chip_gen: v6e
topology: v6e:2x2x1
jax: 0.10.0
libtpu: 0.0.40
codegen_flags: <defaults>
</compile_context>

<pallas_src>
import jax
import jax.numpy as jnp
from jax.experimental import pallas as pl
from jax.experimental.pallas import tpu as pltpu


# Packed parameter layout (flat f32[16], last entry is padding):
#   [ W1[0,0] W1[0,1] b1[0]  W1[1,0] W1[1,1] b1[1]
#     W2[0,0] W2[0,1] b2[0]  W2[1,0] W2[1,1] b2[1]
#     W3[0,0] W3[0,1] b3[0]  <pad> ]
# Weights use the PyTorch (out_features, in_features) convention.
_N_PACKED = 16


def _mlp_kernel(p_ref, xt_ref, ot_ref):
    """Fused 3-layer MLP, pure VPU (no MXU).

    p_ref : SMEM (16,) f32   packed parameters
    xt_ref: VMEM (2, TB) f32 batch-transposed inputs (features on sublanes)
    ot_ref: VMEM (1, TB) f32 lane-dense output
    """
    x0 = xt_ref[0:1, :]  # (1, TB)
    x1 = xt_ref[1:2, :]  # (1, TB)

    # Layer 1: Linear(2, 2) + Sigmoid  (unrolled scalar*vector FMAs)
    h1_0 = jax.nn.sigmoid(p_ref[0] * x0 + p_ref[1] * x1 + p_ref[2])
    h1_1 = jax.nn.sigmoid(p_ref[3] * x0 + p_ref[4] * x1 + p_ref[5])

    # Layer 2: Linear(2, 2) + Sigmoid
    h2_0 = jax.nn.sigmoid(p_ref[6] * h1_0 + p_ref[7] * h1_1 + p_ref[8])
    h2_1 = jax.nn.sigmoid(p_ref[9] * h1_0 + p_ref[10] * h1_1 + p_ref[11])

    # Layer 3: Linear(2, 1) + Sigmoid
    ot_ref[...] = jax.nn.sigmoid(
        p_ref[12] * h2_0 + p_ref[13] * h2_1 + p_ref[14]
    ).astype(ot_ref.dtype)


def neural_network_forward(x, packed_params, *, tb=2048):
    """x: (B, 2) float32 -> (B, 1) float32."""
    B = x.shape[0]
    # Tile size: multiple of 128 lanes, capped at `tb` (tb must be a mult. of 128).
    TB = min(tb, pl.cdiv(B, 128) * 128)
    B_pad = pl.cdiv(B, TB) * TB

    xt = jnp.asarray(x, jnp.float32).T  # (2, B) — batch along lanes
    if B_pad != B:
        xt = jnp.pad(xt, ((0, 0), (0, B_pad - B)))

    out_t = pl.pallas_call(
        _mlp_kernel,
        out_shape=jax.ShapeDtypeStruct((1, B_pad), jnp.float32),
        grid=(B_pad // TB,),
        in_specs=[
            pl.BlockSpec(memory_space=pltpu.MemorySpace.SMEM),  # packed params
            pl.BlockSpec((2, TB), lambda i: (0, i)),            # x^T tile
        ],
        out_specs=pl.BlockSpec((1, TB), lambda i: (0, i)),
        compiler_params=pltpu.CompilerParams(
            dimension_semantics=("parallel",),
        ),
    )(packed_params, xt)

    return out_t[:, :B].T  # (B, 1)


def init_params(key):
    """PyTorch nn.Linear default init: U(-1/sqrt(fan_in), 1/sqrt(fan_in)).
    Weights stored (out_features, in_features), biases (out_features,)."""
    def linear(k, fan_in, fan_out):
        kw, kb = jax.random.split(k)
        bound = 1.0 / float(fan_in) ** 0.5
        w = jax.random.uniform(kw, (fan_out, fan_in), jnp.float32, -bound, bound)
        b = jax.random.uniform(kb, (fan_out,), jnp.float32, -bound, bound)
        return w, b

    k1, k2, k3 = jax.random.split(key, 3)
    w1, b1 = linear(k1, 2, 2)
    w2, b2 = linear(k2, 2, 2)
    w3, b3 = linear(k3, 2, 1)
    return (w1, b1, w2, b2, w3, b3)


def pack_params(params):
    """Pack (W, b) triplets into the flat f32[16] SMEM layout used by the kernel."""
    w1, b1, w2, b2, w3, b3 = params
    flat = jnp.concatenate([
        jnp.concatenate([w1, b1[:, None]], axis=1).reshape(-1),  # 6
        jnp.concatenate([w2, b2[:, None]], axis=1).reshape(-1),  # 6
        jnp.concatenate([w3, b3[:, None]], axis=1).reshape(-1),  # 3
    ]).astype(jnp.float32)
    return jnp.pad(flat, (0, _N_PACKED - flat.shape[0]))


def _ref_forward(x, params):
    """Pure-JAX reference (PyTorch convention: y = x @ W.T + b)."""
    w1, b1, w2, b2, w3, b3 = params
    h = jax.nn.sigmoid(x @ w1.T + b1)
    h = jax.nn.sigmoid(h @ w2.T + b2)
    return jax.nn.sigmoid(h @ w3.T + b3)


if __name__ == "__main__":
    key = jax.random.PRNGKey(0)
    k_params, k_x1, k_x2 = jax.random.split(key, 3)

    params = init_params(k_params)
    packed = pack_params(params)

    # Small / toy batch (single 128-lane tile after padding).
    x_small = jax.random.normal(k_x1, (8, 2), dtype=jnp.float32)
    out_small = jax.block_until_ready(neural_network_forward(x_small, packed))
    ref_small = _ref_forward(x_small, params)
    assert out_small.shape == (8, 1), out_small.shape
    assert jnp.allclose(out_small, ref_small, atol=1e-5, rtol=1e-5)

    # Larger batch exercising the multi-tile "parallel" grid path.
    x_big = jax.random.normal(k_x2, (4100, 2), dtype=jnp.float32)
    out_big = jax.block_until_ready(neural_network_forward(x_big, packed))
    ref_big = _ref_forward(x_big, params)
    assert out_big.shape == (4100, 1), out_big.shape
    assert jnp.allclose(out_big, ref_big, atol=1e-5, rtol=1e-5)

    print("KERNEL_OK")
</pallas_src>

<mosaic_0001>
module attributes {stable_mosaic.version = 11 : i64} {
  func.func @_mlp_kernel(%arg0: i32, %arg1: memref<16xf32, #tpu.memory_space<smem>>, %arg2: memref<2x128xf32, #tpu.memory_space<vmem>>, %arg3: memref<1x128xf32, #tpu.memory_space<vmem>>) attributes {dimension_semantics = [#tpu.dimension_semantics<parallel>], iteration_bounds = array<i64: 1>, scalar_prefetch = 0 : i64, scratch_operands = 0 : i64, tpu.core_type = #tpu.core_type<tc>, window_params = [{transform_indices = @transform_0, window_bounds = array<i64: 16>}, {transform_indices = @transform_1, window_bounds = array<i64: 2, 128>}, {transform_indices = @transform_2, window_bounds = array<i64: 1, 128>}]} {
    %c0 = arith.constant 0 : index
    %c0_0 = arith.constant 0 : index
    %0 = vector.load %arg2[%c0, %c0_0] : memref<2x128xf32, #tpu.memory_space<vmem>>, vector<1x128xf32>
    %c1 = arith.constant 1 : index
    %c0_1 = arith.constant 0 : index
    %1 = vector.load %arg2[%c1, %c0_1] : memref<2x128xf32, #tpu.memory_space<vmem>>, vector<1x128xf32>
    %c0_2 = arith.constant 0 : index
    %2 = memref.load %arg1[%c0_2] : memref<16xf32, #tpu.memory_space<smem>>
    %3 = vector.broadcast %2 : f32 to vector<1x128xf32>
    %4 = arith.mulf %3, %0 : vector<1x128xf32>
    %c1_3 = arith.constant 1 : index
    %5 = memref.load %arg1[%c1_3] : memref<16xf32, #tpu.memory_space<smem>>
    %6 = vector.broadcast %5 : f32 to vector<1x128xf32>
    %7 = arith.mulf %6, %1 : vector<1x128xf32>
    %8 = arith.addf %4, %7 : vector<1x128xf32>
    %c2 = arith.constant 2 : index
    %9 = memref.load %arg1[%c2] : memref<16xf32, #tpu.memory_space<smem>>
    %10 = vector.broadcast %9 : f32 to vector<1x128xf32>
    %11 = arith.addf %8, %10 : vector<1x128xf32>
    %12 = arith.negf %11 : vector<1x128xf32>
    %13 = math.exp %12 : vector<1x128xf32>
    %cst = arith.constant 1.000000e+00 : f32
    %14 = vector.broadcast %cst : f32 to vector<1x128xf32>
    %15 = arith.addf %14, %13 : vector<1x128xf32>
    %16 = arith.divf %14, %15 : vector<1x128xf32>
    %c3 = arith.constant 3 : index
    %17 = memref.load %arg1[%c3] : memref<16xf32, #tpu.memory_space<smem>>
    %18 = vector.broadcast %17 : f32 to vector<1x128xf32>
    %19 = arith.mulf %18, %0 : vector<1x128xf32>
    %c4 = arith.constant 4 : index
    %20 = memref.load %arg1[%c4] : memref<16xf32, #tpu.memory_space<smem>>
    %21 = vector.broadcast %20 : f32 to vector<1x128xf32>
    %22 = arith.mulf %21, %1 : vector<1x128xf32>
    %23 = arith.addf %19, %22 : vector<1x128xf32>
    %c5 = arith.constant 5 : index
    %24 = memref.load %arg1[%c5] : memref<16xf32, #tpu.memory_space<smem>>
    %25 = vector.broadcast %24 : f32 to vector<1x128xf32>
    %26 = arith.addf %23, %25 : vector<1x128xf32>
    %27 = arith.negf %26 : vector<1x128xf32>
    %28 = math.exp %27 : vector<1x128xf32>
    %cst_4 = arith.constant 1.000000e+00 : f32
    %29 = vector.broadcast %cst_4 : f32 to vector<1x128xf32>
    %30 = arith.addf %29, %28 : vector<1x128xf32>
    %31 = arith.divf %29, %30 : vector<1x128xf32>
    %c6 = arith.constant 6 : index
    %32 = memref.load %arg1[%c6] : memref<16xf32, #tpu.memory_space<smem>>
    %33 = vector.broadcast %32 : f32 to vector<1x128xf32>
    %34 = arith.mulf %33, %16 : vector<1x128xf32>
    %c7 = arith.constant 7 : index
    %35 = memref.load %arg1[%c7] : memref<16xf32, #tpu.memory_space<smem>>
    %36 = vector.broadcast %35 : f32 to vector<1x128xf32>
    %37 = arith.mulf %36, %31 : vector<1x128xf32>
    %38 = arith.addf %34, %37 : vector<1x128xf32>
    %c8 = arith.constant 8 : index
    %39 = memref.load %arg1[%c8] : memref<16xf32, #tpu.memory_space<smem>>
    %40 = vector.broadcast %39 : f32 to vector<1x128xf32>
    %41 = arith.addf %38, %40 : vector<1x128xf32>
    %42 = arith.negf %41 : vector<1x128xf32>
    %43 = math.exp %42 : vector<1x128xf32>
    %cst_5 = arith.constant 1.000000e+00 : f32
    %44 = vector.broadcast %cst_5 : f32 to vector<1x128xf32>
    %45 = arith.addf %44, %43 : vector<1x128xf32>
    %46 = arith.divf %44, %45 : vector<1x128xf32>
    %c9 = arith.constant 9 : index
    %47 = memref.load %arg1[%c9] : memref<16xf32, #tpu.memory_space<smem>>
    %48 = vector.broadcast %47 : f32 to vector<1x128xf32>
    %49 = arith.mulf %48, %16 : vector<1x128xf32>
    %c10 = arith.constant 10 : index
    %50 = memref.load %arg1[%c10] : memref<16xf32, #tpu.memory_space<smem>>
    %51 = vector.broadcast %50 : f32 to vector<1x128xf32>
    %52 = arith.mulf %51, %31 : vector<1x128xf32>
    %53 = arith.addf %49, %52 : vector<1x128xf32>
    %c11 = arith.constant 11 : index
    %54 = memref.load %arg1[%c11] : memref<16xf32, #tpu.memory_space<smem>>
    %55 = vector.broadcast %54 : f32 to vector<1x128xf32>
    %56 = arith.addf %53, %55 : vector<1x128xf32>
    %57 = arith.negf %56 : vector<1x128xf32>
    %58 = math.exp %57 : vector<1x128xf32>
    %cst_6 = arith.constant 1.000000e+00 : f32
    %59 = vector.broadcast %cst_6 : f32 to vector<1x128xf32>
    %60 = arith.addf %59, %58 : vector<1x128xf32>
    %61 = arith.divf %59, %60 : vector<1x128xf32>
    %c12 = arith.constant 12 : index
    %62 = memref.load %arg1[%c12] : memref<16xf32, #tpu.memory_space<smem>>
    %63 = vector.broadcast %62 : f32 to vector<1x128xf32>
    %64 = arith.mulf %63, %46 : vector<1x128xf32>
    %c13 = arith.constant 13 : index
    %65 = memref.load %arg1[%c13] : memref<16xf32, #tpu.memory_space<smem>>
    %66 = vector.broadcast %65 : f32 to vector<1x128xf32>
    %67 = arith.mulf %66, %61 : vector<1x128xf32>
    %68 = arith.addf %64, %67 : vector<1x128xf32>
    %c14 = arith.constant 14 : index
    %69 = memref.load %arg1[%c14] : memref<16xf32, #tpu.memory_space<smem>>
    %70 = vector.broadcast %69 : f32 to vector<1x128xf32>
    %71 = arith.addf %68, %70 : vector<1x128xf32>
    %72 = arith.negf %71 : vector<1x128xf32>
    %73 = math.exp %72 : vector<1x128xf32>
    %cst_7 = arith.constant 1.000000e+00 : f32
    %74 = vector.broadcast %cst_7 : f32 to vector<1x128xf32>
    %75 = arith.addf %74, %73 : vector<1x128xf32>
    %76 = arith.divf %74, %75 : vector<1x128xf32>
    %c0_8 = arith.constant 0 : index
    %c0_9 = arith.constant 0 : index
    %77 = vector.load %arg3[%c0_8, %c0_9] : memref<1x128xf32, #tpu.memory_space<vmem>>, vector<1x128xf32>
    tpu.vector_store %arg3[%c0_8, %c0_9], %76 {strides = array<i32>} : memref<1x128xf32, #tpu.memory_space<vmem>>, vector<1x128xf32>,
    return
  }
  func.func @transform_0(%arg0: i32) -> i32 {
    %c0_i32 = arith.constant 0 : i32
    %c0_i32_0 = arith.constant 0 : i32
    return %c0_i32 : i32
  }
  func.func @transform_1(%arg0: i32) -> (i32, i32) {
    %c0_i32 = arith.constant 0 : i32
    %c0_i32_0 = arith.constant 0 : i32
    return %c0_i32, %arg0 : i32, i32
  }
  func.func @transform_2(%arg0: i32) -> (i32, i32) {
    %c0_i32 = arith.constant 0 : i32
    %c0_i32_0 = arith.constant 0 : i32
    return %c0_i32, %arg0 : i32, i32
  }
}

</mosaic_0001>

<llo_original>
// kernel: tpu_custom_call.1
$region0: #{tpu_custom_call.1}
  #allocation0 [shape = 'u32[]', space=smem, size = 0x4, offset = 0x4, fixed_abs, tag = 'smem constant byte address 0x4 - core index']
  #allocation1 [shape = 'u32[144,128]{1,0:T(1,128)}', space=vmem, size = 0x12000, scoped, tag = 'internal scratch']
  %s0 = inlined_call_operand.hbm [shape: f32[16], index: 0, kind: input, shape index: {}]
  %s1 = inlined_call_operand.hbm [shape: f32[2,128], index: 1, kind: input, shape index: {}]
  %s2 = inlined_call_operand.hbm [shape: f32[1,128], index: 2, kind: output, shape index: {}]
  %s3 = sld [smem:[#allocation0]]
  $region26: #{tpu_custom_call.1} parent=0
    _
  %s5 = ssub.s32 1, %s3
  %s6 = scalar_select 0, %s5, %s3
  $region1: #{tpu_custom_call.1} parent=0
    #allocation2 [shape = 'u8[512]{0}', space=smem, size = 0x200, scoped, tag = 'input window, operand 0, single buffered']
    #allocation3 [shape = 's32[1]{0}', space=sflag, size = 0x4, scoped, tag = 'scoped memory for tpu_custom_call.1']
    #allocation4 [shape = 's32[1]{0}', space=sflag, size = 0x4, scoped, tag = 'scoped memory for tpu_custom_call.1']
    #allocation5 [shape = 's32[1]{0}', space=sflag, size = 0x4, scoped, tag = 'scoped memory for tpu_custom_call.1']
    #allocation6 [shape = 'u8[1024]{0}', space=vmem, size = 0x400, scoped, tag = 'input window, operand 1, single buffered']
    #allocation7 [shape = 'u8[512]{0}', space=vmem, size = 0x400, scoped, tag = 'output window, operand 0, single buffered']
    %7 = vsyncpa [#allocation5], 0
    %8 = vsyncpa [#allocation3], 0
    %9 = vsyncpa [#allocation4], 0
    // Predicated region
    $region2: #{tpu_custom_call.1} parent=1 // pred_check
      _
    $region3: #{tpu_custom_call.1} parent=1 // pred_check_branch
      %11 = sbr.rel (0) target = $region5
    $region4: #{tpu_custom_call.1} parent=1 // pred_region
      %s13 = ssub.s32 16, 16
      %14 = vsyncadd [#allocation5], %s13
      %17 = dma.hbm_to_smem %s0, 16, [#allocation2], [#allocation5]
    $region5: #{tpu_custom_call.1} parent=1 // pred_fallthru
      _
    // Predicated region
    $region6: #{tpu_custom_call.1} parent=1 // pred_check
      _
    $region7: #{tpu_custom_call.1} parent=1 // pred_check_branch
      %19 = sbr.rel (0) target = $region9
    $region8: #{tpu_custom_call.1} parent=1 // pred_region
      %s21 = ssub.s32 32, 32
      %22 = vsyncadd [#allocation3], %s21
      %s24 = sshll.u32 [#allocation6], 4
      %s25 = int_to_ptr.vmem [resolvable:$true] %s24
      %27 = dma.hbm_to_vmem [thread:$0]  %s1, 32, %s25, [#allocation3]
    $region9: #{tpu_custom_call.1} parent=1 // pred_fallthru
      _
    // Predicated region
    $region10: #{tpu_custom_call.1} parent=1 // pred_check
      _
    $region11: #{tpu_custom_call.1} parent=1 // pred_check_branch
      %29 = sbr.rel (0) target = $region13
    $region12: #{tpu_custom_call.1} parent=1 // pred_region
      %30 = dma.done [#allocation5], 16
    $region13: #{tpu_custom_call.1} parent=1 // pred_fallthru
      _
    // Predicated region
    $region14: #{tpu_custom_call.1} parent=1 // pred_check
      _
    $region15: #{tpu_custom_call.1} parent=1 // pred_check_branch
      %32 = sbr.rel (0) target = $region17
    $region16: #{tpu_custom_call.1} parent=1 // pred_region
      %33 = dma.done [#allocation3], 32
    $region17: #{tpu_custom_call.1} parent=1 // pred_fallthru
      _
    %34 = sfence
    %v35 = vld [vmem:[#allocation6] sm:$0x1]
    %v36 = vld [vmem:[#allocation6 + $0x1] sm:$0x1]
    %s37 = sld [smem:[#allocation2]]
    %v38 = vstv %s37
    %v39 = vmul.f32 %v38, %v35
    %s40 = sld [smem:[#allocation2 + $0x1]]
    %v41 = vstv %s40
    %v42 = vmul.f32 %v41, %v36
    %v43 = vadd.f32 %v39, %v42
    %s44 = sld [smem:[#allocation2 + $0x2]]
    %v45 = vstv %s44
    %v46 = vadd.f32 %v43, %v45
    %v47 = vxor.u32 %v46, 2147483648
    %v48 = vmul.f32 %v47, 1.442695
    %v49 = vpow.pop %v48
    %v50 = vadd.f32 %v49, 1.0
    %v51 = vrcp.pop %v50
    %v52 = vmul.f32 1.0, %v51
    %s53 = sld [smem:[#allocation2 + $0x3]]
    %v54 = vstv %s53
    %v55 = vmul.f32 %v54, %v35
    %s56 = sld [smem:[#allocation2 + $0x4]]
    %v57 = vstv %s56
    %v58 = vmul.f32 %v57, %v36
    %v59 = vadd.f32 %v55, %v58
    %s60 = sld [smem:[#allocation2 + $0x5]]
    %v61 = vstv %s60
    %v62 = vadd.f32 %v59, %v61
    %v63 = vxor.u32 %v62, 2147483648
    %v64 = vmul.f32 %v63, 1.442695
    %v65 = vpow.pop %v64
    %v66 = vadd.f32 %v65, 1.0
    %v67 = vrcp.pop %v66
    %v68 = vmul.f32 1.0, %v67
    %s69 = sld [smem:[#allocation2 + $0x6]]
    %v70 = vstv %s69
    %v71 = vmul.f32 %v70, %v52
    %s72 = sld [smem:[#allocation2 + $0x7]]
    %v73 = vstv %s72
    %v74 = vmul.f32 %v73, %v68
    %v75 = vadd.f32 %v71, %v74
    %s76 = sld [smem:[#allocation2 + $0x8]]
    %v77 = vstv %s76
    %v78 = vadd.f32 %v75, %v77
    %v79 = vxor.u32 %v78, 2147483648
    %v80 = vmul.f32 %v79, 1.442695
    %v81 = vpow.pop %v80
    %v82 = vadd.f32 %v81, 1.0
    %v83 = vrcp.pop %v82
    %v84 = vmul.f32 1.0, %v83
    %s85 = sld [smem:[#allocation2 + $0x9]]
    %v86 = vstv %s85
    %v87 = vmul.f32 %v86, %v52
    %s88 = sld [smem:[#allocation2 + $0xa]]
    %v89 = vstv %s88
    %v90 = vmul.f32 %v89, %v68
    %v91 = vadd.f32 %v87, %v90
    %s92 = sld [smem:[#allocation2 + $0xb]]
    %v93 = vstv %s92
    %v94 = vadd.f32 %v91, %v93
    %v95 = vxor.u32 %v94, 2147483648
    %v96 = vmul.f32 %v95, 1.442695
    %v97 = vpow.pop %v96
    %v98 = vadd.f32 %v97, 1.0
    %v99 = vrcp.pop %v98
    %v100 = vmul.f32 1.0, %v99
    %s101 = sld [smem:[#allocation2 + $0xc]]
    %v102 = vstv %s101
    %v103 = vmul.f32 %v102, %v84
    %s104 = sld [smem:[#allocation2 + $0xd]]
    %v105 = vstv %s104
    %v106 = vmul.f32 %v105, %v100
    %v107 = vadd.f32 %v103, %v106
    %s108 = sld [smem:[#allocation2 + $0xe]]
    %v109 = vstv %s108
    %v110 = vadd.f32 %v107, %v109
    %v111 = vxor.u32 %v110, 2147483648
    %v112 = vmul.f32 %v111, 1.442695
    %v113 = vpow.pop %v112
    %v114 = vadd.f32 %v113, 1.0
    %v115 = vrcp.pop %v114
    %v116 = vmul.f32 1.0, %v115
    %117 = vst [vmem:[#allocation7] sm:$0x1] %v116
    // Predicated region
    $region18: #{tpu_custom_call.1} parent=1 // pred_check
      _
    $region19: #{tpu_custom_call.1} parent=1 // pred_check_branch
      %119 = sbr.rel (0) target = $region21
    $region20: #{tpu_custom_call.1} parent=1 // pred_region
      %s121 = ssub.s32 16, 16
      %122 = vsyncadd [#allocation4], %s121
      %s124 = sshll.u32 [#allocation7], 4
      %s125 = int_to_ptr.vmem [resolvable:$true] %s124
      %127 = dma.vmem_to_hbm [thread:$0]  %s125, 16, %s2, [#allocation4]
    $region21: #{tpu_custom_call.1} parent=1 // pred_fallthru
      _
    // Predicated region
    $region22: #{tpu_custom_call.1} parent=1 // pred_check
      _
    $region23: #{tpu_custom_call.1} parent=1 // pred_check_branch
      %129 = sbr.rel (0) target = $region25
    $region24: #{tpu_custom_call.1} parent=1 // pred_region
      %130 = dma.done [#allocation4], 16
    $region25: #{tpu_custom_call.1} parent=1 // pred_fallthru
      _
    %131 = vsyncpa [#allocation3], 1
    %132 = vsyncpa [#allocation4], 1
    %133 = vsyncpa [#allocation5], 1

</llo_original>
